<compile_context>
chip_gen: v5e
topology: v5e:2x2
jax: 0.10.0
libtpu: 0.0.40
codegen_flags: <defaults>
</compile_context>

<pallas_src>
import functools

import jax
import jax.numpy as jnp
from jax.experimental import pallas as pl
from jax.experimental.pallas import tpu as pltpu

_EPS = 1e-6  # PairwiseDistance default eps


def _triplet_partial_kernel(a_ref, p_ref, n_ref, out_ref, *, batch, tile_b):
    a = a_ref[...].astype(jnp.float32)
    p = p_ref[...].astype(jnp.float32)
    n = n_ref[...].astype(jnp.float32)

    # PairwiseDistance(2): ||x1 - x2 + eps||_2 along the last (lane) dim.
    d_pos = a - p + _EPS
    d_neg = a - n + _EPS
    pos_dist = jnp.sqrt(jnp.sum(d_pos * d_pos, axis=-1, keepdims=True))  # (TB, 1)
    neg_dist = jnp.sqrt(jnp.sum(d_neg * d_neg, axis=-1, keepdims=True))  # (TB, 1)

    # logistic(x) = log2(1 + 2^x), in the overflow-safe form
    #   max(x, 0) + log2(1 + 2^-|x|)
    x = neg_dist - pos_dist                                              # (TB, 1)
    loss_per_row = jnp.maximum(x, 0.0) + jnp.log2(1.0 + jnp.exp2(-jnp.abs(x)))

    # Mask rows beyond the true batch (padding of the last tile).
    row_id = (jax.lax.broadcasted_iota(jnp.int32, (tile_b, 1), 0)
              + pl.program_id(0) * tile_b)
    loss_per_row = jnp.where(row_id < batch, loss_per_row, 0.0)

    tile_sum = jnp.sum(loss_per_row, axis=0, keepdims=True)              # (1, 1)
    # Lane-dense, single store per grid step (no masked vst, no revisited block).
    out_ref[...] = jnp.broadcast_to(tile_sum, (1, 128))


def _pick_tile_b(batch, feat, itemsize):
    """Batch-tile size: 3 inputs x 2 pipeline buffers x TB x D x itemsize must fit
    comfortably inside scoped VMEM on all generations (v7x: 64 MiB physical)."""
    vmem_budget_bytes = 12 * 1024 * 1024          # conservative, fits every gen
    max_tb = max(1, vmem_budget_bytes // (3 * 2 * feat * itemsize))
    # Sublane alignment: 8 rows for f32, 16 for bf16, etc.
    align = 8 * max(1, 4 // itemsize)
    tb = min(batch, max_tb, 1024)
    tb = max(align, (tb // align) * align)
    return tb


def triplet_loss(anchor, positive, negative):
    """anchor/positive/negative: (B, D) arrays. Returns scalar float32 loss."""
    assert anchor.shape == positive.shape == negative.shape
    B, D = anchor.shape
    itemsize = jnp.dtype(anchor.dtype).itemsize
    TB = _pick_tile_b(B, D, itemsize)
    num_tiles = pl.cdiv(B, TB)

    kernel = functools.partial(_triplet_partial_kernel, batch=B, tile_b=TB)

    partials = pl.pallas_call(
        kernel,
        out_shape=jax.ShapeDtypeStruct((num_tiles, 128), jnp.float32),
        grid=(num_tiles,),
        in_specs=[
            pl.BlockSpec((TB, D), lambda i: (i, 0)),
            pl.BlockSpec((TB, D), lambda i: (i, 0)),
            pl.BlockSpec((TB, D), lambda i: (i, 0)),
        ],
        out_specs=pl.BlockSpec((1, 128), lambda i: (i, 0)),
        compiler_params=pltpu.CompilerParams(
            dimension_semantics=("parallel",),      # independent tiles -> megacore OK
            vmem_limit_bytes=32 * 1024 * 1024,
        ),
    )(anchor, positive, negative)

    # Every lane of a partial block holds the same tile sum; take lane 0.
    return partials[:, 0].sum() * (1.0 / B)


def _triplet_loss_ref(anchor, positive, negative):
    """Pure-JAX reference mirroring the PyTorch module."""
    a = anchor.astype(jnp.float32)
    p = positive.astype(jnp.float32)
    n = negative.astype(jnp.float32)
    pos = jnp.sqrt(jnp.sum((a - p + _EPS) ** 2, axis=-1))
    neg = jnp.sqrt(jnp.sum((a - n + _EPS) ** 2, axis=-1))
    return jnp.mean(jnp.log2(1.0 + jnp.exp2(neg - pos)))


if __name__ == "__main__":
    key = jax.random.PRNGKey(0)

    # Case 1: small, aligned (B multiple of the tile).
    k_a, k_p, k_n = jax.random.split(key, 3)
    B, D = 8, 128
    anchor = jax.random.normal(k_a, (B, D), dtype=jnp.float32)
    positive = jax.random.normal(k_p, (B, D), dtype=jnp.float32)
    negative = jax.random.normal(k_n, (B, D), dtype=jnp.float32)

    loss = triplet_loss(anchor, positive, negative)
    jax.block_until_ready(loss)
    ref = _triplet_loss_ref(anchor, positive, negative)
    assert jnp.allclose(loss, ref, rtol=1e-5, atol=1e-5), (loss, ref)

    # Case 2: batch not a multiple of the tile -> exercises the row mask.
    k_a2, k_p2, k_n2 = jax.random.split(jax.random.PRNGKey(1), 3)
    B2, D2 = 20, 256
    anchor2 = jax.random.normal(k_a2, (B2, D2), dtype=jnp.float32)
    positive2 = jax.random.normal(k_p2, (B2, D2), dtype=jnp.float32)
    negative2 = jax.random.normal(k_n2, (B2, D2), dtype=jnp.float32)

    loss2 = triplet_loss(anchor2, positive2, negative2)
    jax.block_until_ready(loss2)
    ref2 = _triplet_loss_ref(anchor2, positive2, negative2)
    assert jnp.allclose(loss2, ref2, rtol=1e-5, atol=1e-5), (loss2, ref2)

    print("KERNEL_OK")
</pallas_src>

<mosaic_0001>
module attributes {stable_mosaic.version = 11 : i64} {
  func.func @_triplet_partial_kernel(%arg0: i32, %arg1: memref<8x128xf32, #tpu.memory_space<vmem>>, %arg2: memref<8x128xf32, #tpu.memory_space<vmem>>, %arg3: memref<8x128xf32, #tpu.memory_space<vmem>>, %arg4: memref<1x128xf32, #tpu.memory_space<vmem>>) attributes {dimension_semantics = [#tpu.dimension_semantics<parallel>], iteration_bounds = array<i64: 1>, scalar_prefetch = 0 : i64, scratch_operands = 0 : i64, tpu.core_type = #tpu.core_type<tc>, window_params = [{transform_indices = @transform_0, window_bounds = array<i64: 8, 128>}, {transform_indices = @transform_1, window_bounds = array<i64: 8, 128>}, {transform_indices = @transform_2, window_bounds = array<i64: 8, 128>}, {transform_indices = @transform_3, window_bounds = array<i64: 1, 128>}]} {
    %c0 = arith.constant 0 : index
    %c0_0 = arith.constant 0 : index
    %0 = vector.load %arg1[%c0, %c0_0] : memref<8x128xf32, #tpu.memory_space<vmem>>, vector<8x128xf32>
    %c0_1 = arith.constant 0 : index
    %c0_2 = arith.constant 0 : index
    %1 = vector.load %arg2[%c0_1, %c0_2] : memref<8x128xf32, #tpu.memory_space<vmem>>, vector<8x128xf32>
    %c0_3 = arith.constant 0 : index
    %c0_4 = arith.constant 0 : index
    %2 = vector.load %arg3[%c0_3, %c0_4] : memref<8x128xf32, #tpu.memory_space<vmem>>, vector<8x128xf32>
    %3 = arith.subf %0, %1 : vector<8x128xf32>
    %cst = arith.constant 9.99999997E-7 : f32
    %4 = vector.broadcast %cst : f32 to vector<8x128xf32>
    %5 = arith.addf %3, %4 : vector<8x128xf32>
    %6 = arith.subf %0, %2 : vector<8x128xf32>
    %cst_5 = arith.constant 9.99999997E-7 : f32
    %7 = vector.broadcast %cst_5 : f32 to vector<8x128xf32>
    %8 = arith.addf %6, %7 : vector<8x128xf32>
    %9 = arith.mulf %5, %5 : vector<8x128xf32>
    %cst_6 = arith.constant dense<0.000000e+00> : vector<8xf32>
    %10 = vector.multi_reduction <add>, %9, %cst_6 [1] : vector<8x128xf32> to vector<8xf32>
    %11 = vector.shape_cast %10 : vector<8xf32> to vector<8x1xf32>
    %12 = math.sqrt %11 : vector<8x1xf32>
    %13 = arith.mulf %8, %8 : vector<8x128xf32>
    %cst_7 = arith.constant dense<0.000000e+00> : vector<8xf32>
    %14 = vector.multi_reduction <add>, %13, %cst_7 [1] : vector<8x128xf32> to vector<8xf32>
    %15 = vector.shape_cast %14 : vector<8xf32> to vector<8x1xf32>
    %16 = math.sqrt %15 : vector<8x1xf32>
    %17 = arith.subf %16, %12 : vector<8x1xf32>
    %cst_8 = arith.constant 0.000000e+00 : f32
    %18 = vector.broadcast %cst_8 : f32 to vector<8x1xf32>
    %19 = arith.maximumf %17, %18 : vector<8x1xf32>
    %20 = math.absf %17 : vector<8x1xf32>
    %cst_9 = arith.constant 0.000000e+00 : f32
    %21 = vector.broadcast %cst_9 : f32 to vector<8x1xf32>
    %22 = arith.subf %21, %20 : vector<8x1xf32>
    %23 = math.exp2 %22 : vector<8x1xf32>
    %cst_10 = arith.constant 1.000000e+00 : f32
    %24 = vector.broadcast %cst_10 : f32 to vector<8x1xf32>
    %25 = arith.addf %24, %23 : vector<8x1xf32>
    %26 = math.log %25 : vector<8x1xf32>
    %cst_11 = arith.constant 2.000000e+00 : f32
    %27 = math.log %cst_11 : f32
    %28 = vector.broadcast %27 : f32 to vector<8x1xf32>
    %29 = arith.divf %26, %28 : vector<8x1xf32>
    %30 = arith.addf %19, %29 : vector<8x1xf32>
    %31 = tpu.iota {dimensions = array<i32: 0>} : vector<8x1xi32>
    %c8_i32 = arith.constant 8 : i32
    %32 = arith.muli %arg0, %c8_i32 : i32
    %33 = vector.broadcast %32 : i32 to vector<8x1xi32>
    %34 = arith.addi %31, %33 : vector<8x1xi32>
    %c8_i32_12 = arith.constant 8 : i32
    %35 = vector.broadcast %c8_i32_12 : i32 to vector<8x1xi32>
    %36 = arith.cmpi slt, %34, %35 : vector<8x1xi32>
    %cst_13 = arith.constant 0.000000e+00 : f32
    %37 = vector.broadcast %cst_13 : f32 to vector<8x1xf32>
    %38 = arith.select %36, %30, %37 : vector<8x1xi1>, vector<8x1xf32>
    %cst_14 = arith.constant dense<0.000000e+00> : vector<1xf32>
    %39 = vector.multi_reduction <add>, %38, %cst_14 [0] : vector<8x1xf32> to vector<1xf32>
    %40 = vector.shape_cast %39 : vector<1xf32> to vector<1x1xf32>
    %41 = vector.shape_cast %40 : vector<1x1xf32> to vector<1x1xf32>
    %42 = vector.broadcast %41 : vector<1x1xf32> to vector<1x128xf32>
    %c0_15 = arith.constant 0 : index
    %c0_16 = arith.constant 0 : index
    %43 = vector.load %arg4[%c0_15, %c0_16] : memref<1x128xf32, #tpu.memory_space<vmem>>, vector<1x128xf32>
    tpu.vector_store %arg4[%c0_15, %c0_16], %42 {strides = array<i32>} : memref<1x128xf32, #tpu.memory_space<vmem>>, vector<1x128xf32>,
    return
  }
  func.func @transform_0(%arg0: i32) -> (i32, i32) {
    %c0_i32 = arith.constant 0 : i32
    %c0_i32_0 = arith.constant 0 : i32
    return %arg0, %c0_i32 : i32, i32
  }
  func.func @transform_1(%arg0: i32) -> (i32, i32) {
    %c0_i32 = arith.constant 0 : i32
    %c0_i32_0 = arith.constant 0 : i32
    return %arg0, %c0_i32 : i32, i32
  }
  func.func @transform_2(%arg0: i32) -> (i32, i32) {
    %c0_i32 = arith.constant 0 : i32
    %c0_i32_0 = arith.constant 0 : i32
    return %arg0, %c0_i32 : i32, i32
  }
  func.func @transform_3(%arg0: i32) -> (i32, i32) {
    %c0_i32 = arith.constant 0 : i32
    %c0_i32_0 = arith.constant 0 : i32
    return %arg0, %c0_i32 : i32, i32
  }
}

</mosaic_0001>

<llo_original>
// kernel: tpu_custom_call.1
$region0: #{tpu_custom_call.1}
  #allocation0 [shape = 'u32[]', space=smem, size = 0x4, offset = 0x4, fixed_abs, tag = 'smem constant byte address 0x4 - core index']
  #allocation1 [shape = 'u32[72,128]{1,0:T(1,128)}', space=vmem, size = 0x9000, scoped, tag = 'internal scratch']
  %s0 = inlined_call_operand.hbm [shape: f32[8,128], index: 0, kind: input, shape index: {}]
  %s1 = inlined_call_operand.hbm [shape: f32[8,128], index: 1, kind: input, shape index: {}]
  %s2 = inlined_call_operand.hbm [shape: f32[8,128], index: 2, kind: input, shape index: {}]
  %s3 = inlined_call_operand.hbm [shape: f32[1,128], index: 3, kind: output, shape index: {}]
  %s4 = sld [smem:[#allocation0]]
  $region34: #{tpu_custom_call.1} parent=0
    _
  %s6 = ssub.s32 1, %s4
  %s7 = scalar_select 0, %s6, %s4
  $region1: #{tpu_custom_call.1} parent=0
    #allocation2 [shape = 'u8[4096]{0}', space=vmem, size = 0x1000, scoped, tag = 'input window, operand 0, single buffered']
    #allocation3 [shape = 's32[1]{0}', space=sflag, size = 0x4, scoped, tag = 'scoped memory for tpu_custom_call.1']
    #allocation4 [shape = 's32[1]{0}', space=sflag, size = 0x4, scoped, tag = 'scoped memory for tpu_custom_call.1']
    #allocation5 [shape = 'u8[4096]{0}', space=vmem, size = 0x1000, scoped, tag = 'input window, operand 1, single buffered']
    #allocation6 [shape = 's32[1]{0}', space=sflag, size = 0x4, scoped, tag = 'scoped memory for tpu_custom_call.1']
    #allocation7 [shape = 'u8[4096]{0}', space=vmem, size = 0x1000, scoped, tag = 'input window, operand 2, single buffered']
    #allocation8 [shape = 'u8[512]{0}', space=vmem, size = 0x400, scoped, tag = 'output window, operand 0, single buffered']
    %8 = vsyncpa [#allocation3], 0
    %9 = vsyncpa [#allocation6], 0
    %10 = vsyncpa [#allocation4], 0
    // Predicated region
    $region2: #{tpu_custom_call.1} parent=1 // pred_check
      _
    $region3: #{tpu_custom_call.1} parent=1 // pred_check_branch
      %12 = sbr.rel (0) target = $region5
    $region4: #{tpu_custom_call.1} parent=1 // pred_region
      %14 = vsyncadd [#allocation3], 0
      %s16 = sshll.u32 %s0, 4
      %s17 = int_to_ptr.hbm [resolvable:$true] %s16
      %s18 = sshll.u32 [#allocation2], 4
      %s19 = int_to_ptr.vmem [resolvable:$true] %s18
      %21 = dma.hbm_to_vmem [thread:$0]  %s17, 128, %s19, [#allocation3]
    $region5: #{tpu_custom_call.1} parent=1 // pred_fallthru
      _
    // Predicated region
    $region6: #{tpu_custom_call.1} parent=1 // pred_check
      _
    $region7: #{tpu_custom_call.1} parent=1 // pred_check_branch
      %23 = sbr.rel (0) target = $region9
    $region8: #{tpu_custom_call.1} parent=1 // pred_region
      %25 = vsyncadd [#allocation6], 0
      %s27 = sshll.u32 %s1, 4
      %s28 = int_to_ptr.hbm [resolvable:$true] %s27
      %s29 = sshll.u32 [#allocation5], 4
      %s30 = int_to_ptr.vmem [resolvable:$true] %s29
      %32 = dma.hbm_to_vmem [thread:$0]  %s28, 128, %s30, [#allocation6]
    $region9: #{tpu_custom_call.1} parent=1 // pred_fallthru
      _
    // Predicated region
    $region10: #{tpu_custom_call.1} parent=1 // pred_check
      _
    $region11: #{tpu_custom_call.1} parent=1 // pred_check_branch
      %34 = sbr.rel (0) target = $region13
    $region12: #{tpu_custom_call.1} parent=1 // pred_region
      %36 = vsyncadd [#allocation6], 0
      %s38 = sshll.u32 %s2, 4
      %s39 = int_to_ptr.hbm [resolvable:$true] %s38
      %s40 = sshll.u32 [#allocation7], 4
      %s41 = int_to_ptr.vmem [resolvable:$true] %s40
      %43 = dma.hbm_to_vmem [thread:$0]  %s39, 128, %s41, [#allocation6]
    $region13: #{tpu_custom_call.1} parent=1 // pred_fallthru
      _
    // Predicated region
    $region14: #{tpu_custom_call.1} parent=1 // pred_check
      _
    $region15: #{tpu_custom_call.1} parent=1 // pred_check_branch
      %45 = sbr.rel (0) target = $region17
    $region16: #{tpu_custom_call.1} parent=1 // pred_region
      %47 = dma.done [#allocation3], 128
    $region17: #{tpu_custom_call.1} parent=1 // pred_fallthru
      _
    // Predicated region
    $region18: #{tpu_custom_call.1} parent=1 // pred_check
      _
    $region19: #{tpu_custom_call.1} parent=1 // pred_check_branch
      %49 = sbr.rel (0) target = $region21
    $region20: #{tpu_custom_call.1} parent=1 // pred_region
      %51 = dma.done [#allocation6], 128
    $region21: #{tpu_custom_call.1} parent=1 // pred_fallthru
      _
    // Predicated region
    $region22: #{tpu_custom_call.1} parent=1 // pred_check
      _
    $region23: #{tpu_custom_call.1} parent=1 // pred_check_branch
      %53 = sbr.rel (0) target = $region25
    $region24: #{tpu_custom_call.1} parent=1 // pred_region
      %55 = dma.done [#allocation6], 128
    $region25: #{tpu_custom_call.1} parent=1 // pred_fallthru
      _
    %v56 = vld [vmem:[#allocation2] sm:$0xff]
    %v57 = vld [vmem:[#allocation5] sm:$0xff]
    %v58 = vld [vmem:[#allocation7] sm:$0xff]
    %v59 = vsub.f32 %v56, %v57
    %v60 = vadd.f32 %v59, 1e-06
    %v61 = vsub.f32 %v56, %v58
    %v62 = vadd.f32 %v61, 1e-06
    %v63 = vmul.f32 %v60, %v60
    %64 = vadd.xlane.f32.xlu0 %v63
    %v65 = vpop.xlane.xlu0 %64
    %v66 = vrsqrt.pop %v65
    %v67 = vmul.f32 %v66, %v65
    %v68 = vmul.f32 %v67, %v66
    %v69 = vmul.f32 0.5, %v68
    %v70 = vsub.f32 1.5, %v69
    %v71 = vmul.f32 %v66, %v70
    %v72 = vmul.f32 %v65, %v71
    %vm73 = vcmp.eq.f32.partialorder %v65, inf
    %v74 = vsel %vm73, %v65, %v72
    %vm75 = vcmp.eq.f32.partialorder %v65, 0.0
    %v76 = vand.u32 %v65, 2147483648
    %v77 = vsel %vm75, %v76, %v74
    %v78 = vmul.f32 %v62, %v62
    %79 = vadd.xlane.f32.xlu0 %v78
    %v80 = vpop.xlane.xlu0 %79
    %v81 = vrsqrt.pop %v80
    %v82 = vmul.f32 %v81, %v80
    %v83 = vmul.f32 %v82, %v81
    %v84 = vmul.f32 0.5, %v83
    %v85 = vsub.f32 1.5, %v84
    %v86 = vmul.f32 %v81, %v85
    %v87 = vmul.f32 %v80, %v86
    %vm88 = vcmp.eq.f32.partialorder %v80, inf
    %v89 = vsel %vm88, %v80, %v87
    %vm90 = vcmp.eq.f32.partialorder %v80, 0.0
    %v91 = vand.u32 %v80, 2147483648
    %v92 = vsel %vm90, %v91, %v89
    %v93 = vsub.f32 %v92, %v77
    %v94 = vmax.f32 %v93, 0.0
    %v95 = vand.u32 2147483647, %v93
    %v96 = vsub.f32 0.0, %v95
    %v97 = vpow.pop %v96
    %v98 = vadd.f32 %v97, 1.0
    %v99 = vlog2.pop %v98
    %v100 = vmul.f32 %v99, 0.6931472
    %v101 = vrcp.pop 0.6931472
    %v102 = vmul.f32 0.6931472, %v101
    %v103 = vsub.f32 1.0, %v102
    %v104 = vmul.f32 %v101, %v103
    %v105 = vadd.f32 %v101, %v104
    %vm106 = vweird.f32 %v101
    %v107 = vsel %vm106, %v101, %v105
    %v108 = vmul.f32 %v100, %v107
    %v109 = vadd.f32 %v94, %v108
    %v110 = vlaneseq
    %v111 = vshrl.u32 %v110, 7
    %s112 = smul.u32 0, 8
    %v113 = vstv %s112
    %v114 = vadd.s32 %v111, %v113
    %vm115 = vcmp.lt.s32.totalorder %v114, 8
    %v116 = vsel %vm115, %v109, 0.0
    %v117 = vrot.slane %v116, 4
    %v118 = vadd.f32 %v116, %v117
    %v119 = vrot.slane %v118, 2
    %v120 = vadd.f32 %v118, %v119
    %v121 = vrot.slane %v120, 1
    %v122 = vadd.f32 %v120, %v121
    %123 = vst [vmem:[#allocation8] sm:$0x1] %v122
    // Predicated region
    $region26: #{tpu_custom_call.1} parent=1 // pred_check
      _
    $region27: #{tpu_custom_call.1} parent=1 // pred_check_branch
      %125 = sbr.rel (0) target = $region29
    $region28: #{tpu_custom_call.1} parent=1 // pred_region
      %127 = vsyncadd [#allocation4], 0
      %s129 = sshll.u32 [#allocation8], 4
      %s130 = int_to_ptr.vmem [resolvable:$true] %s129
      %s131 = sshll.u32 %s3, 4
      %s132 = int_to_ptr.hbm [resolvable:$true] %s131
      %134 = dma.vmem_to_hbm [thread:$0]  %s130, 16, %s132, [#allocation4]
    $region29: #{tpu_custom_call.1} parent=1 // pred_fallthru
      _
    // Predicated region
    $region30: #{tpu_custom_call.1} parent=1 // pred_check
      _
    $region31: #{tpu_custom_call.1} parent=1 // pred_check_branch
      %136 = sbr.rel (0) target = $region33
    $region32: #{tpu_custom_call.1} parent=1 // pred_region
      %138 = dma.done [#allocation4], 16
    $region33: #{tpu_custom_call.1} parent=1 // pred_fallthru
      _
    %139 = vsyncpa [#allocation3], 1
    %140 = vsyncpa [#allocation6], 1
    %141 = vsyncpa [#allocation4], 1

</llo_original>
